<compile_context>
chip_gen: v7x
topology: tpu7x:2x2x1
jax: 0.10.0
libtpu: 0.0.40
codegen_flags: <defaults>
</compile_context>

<pallas_src>
import functools
import math

import jax
import jax.numpy as jnp
from jax import lax
from jax.experimental import pallas as pl
from jax.experimental.pallas import tpu as pltpu

LN_EPS = 1e-5  # PyTorch nn.LayerNorm default


def _round_up(x, m):
    return (x + m - 1) // m * m


def _layernorm_relu(h, gamma, beta):
    """One-pass LayerNorm over the last axis followed by ReLU (all f32)."""
    mu = jnp.mean(h, axis=-1, keepdims=True)
    ms = jnp.mean(h * h, axis=-1, keepdims=True)
    var = ms - mu * mu
    h = (h - mu) * lax.rsqrt(var + LN_EPS)
    return jnp.maximum(h * gamma + beta, 0.0)


def actor_kernel(
    x_ref,      # (TB, S)        f32 activations (batch tile)
    w1_ref,     # (S, H)         bf16, resident
    w2_ref,     # (H, H)         bf16, resident
    w3_ref,     # (H, A_pad)     bf16, resident (lane-padded)
    vec_ref,    # (8, H)         f32 packed [b1,g1,be1,b2,g2,be2,0,0]
    b3_ref,     # (1, A_pad)     f32 (lane-padded)
    o_ref,      # (TB, A_pad)    f32 lane-dense output
):
    # Packed per-feature vectors: row 0=b1, 1=g1, 2=be1, 3=b2, 4=g2, 5=be2.
    b1, g1, be1 = vec_ref[0:1, :], vec_ref[1:2, :], vec_ref[2:3, :]
    b2, g2, be2 = vec_ref[3:4, :], vec_ref[4:5, :], vec_ref[5:6, :]

    x = x_ref[...].astype(jnp.bfloat16)

    # fc1: Linear (bf16 MXU, f32 accumulate) -> LayerNorm -> ReLU (f32)
    h = jnp.dot(x, w1_ref[...], preferred_element_type=jnp.float32) + b1
    h = _layernorm_relu(h, g1, be1)

    # fc2: Linear -> LayerNorm -> ReLU
    h = jnp.dot(h.astype(jnp.bfloat16), w2_ref[...],
                preferred_element_type=jnp.float32) + b2
    h = _layernorm_relu(h, g2, be2)

    # fc3 -> tanh ; output is lane-padded (dead lanes hold tanh(0) = 0)
    out = jnp.dot(h.astype(jnp.bfloat16), w3_ref[...],
                  preferred_element_type=jnp.float32) + b3_ref[...]
    o_ref[...] = jnp.tanh(out).astype(o_ref.dtype)


@functools.partial(jax.jit, static_argnames=("action_size", "block_b"))
def actor_forward(x, params, *, action_size, block_b=128):
    """Actor.forward: (B, state_size) f32 -> (B, action_size) f32 in [-1, 1]."""
    w1, w2, w3p, vecs, b3p = params
    B, S = x.shape
    H = w1.shape[1]
    A_pad = w3p.shape[1]

    # Batch tile: at least 8 sublanes, at most block_b; pad B to a multiple.
    tb = min(_round_up(block_b, 8), _round_up(B, 8))
    b_pad = _round_up(B, tb)
    if b_pad != B:
        x = jnp.pad(x, ((0, b_pad - B), (0, 0)))

    out = pl.pallas_call(
        actor_kernel,
        out_shape=jax.ShapeDtypeStruct((b_pad, A_pad), jnp.float32),
        grid_spec=pltpu.PrefetchScalarGridSpec(
            num_scalar_prefetch=0,
            grid=(b_pad // tb,),
            in_specs=[
                pl.BlockSpec((tb, S), lambda i: (i, 0)),       # x: tiled over batch
                pl.BlockSpec((S, H), lambda i: (0, 0)),        # w1: resident
                pl.BlockSpec((H, H), lambda i: (0, 0)),        # w2: resident
                pl.BlockSpec((H, A_pad), lambda i: (0, 0)),    # w3: resident
                pl.BlockSpec((8, H), lambda i: (0, 0)),        # packed b/gamma/beta
                pl.BlockSpec((1, A_pad), lambda i: (0, 0)),    # b3
            ],
            out_specs=pl.BlockSpec((tb, A_pad), lambda i: (i, 0)),
        ),
        compiler_params=pltpu.CompilerParams(
            dimension_semantics=("parallel",),
            # Sized for v7x's 64 MiB physical VMEM; trivially fits v5e/v6e too.
            vmem_limit_bytes=32 * 1024 * 1024,
        ),
    )(x, w1, w2, w3p, vecs, b3p)
    # Strip batch pad and dead output lanes outside the kernel.
    return out[:B, :action_size]


def _orthogonal(key, shape, gain):
    """QR-based orthogonal init (matches semantics of torch orthogonal_)."""
    rows, cols = shape
    n = max(rows, cols)
    a = jax.random.normal(key, (n, n), dtype=jnp.float32)
    q, r = jnp.linalg.qr(a)
    s = jnp.sign(jnp.diag(r))
    s = jnp.where(s == 0, 1.0, s)      # guard against exact-zero diagonal
    q = q * s[None, :]
    return gain * q[:rows, :cols]


def init_actor_params(key, state_size, action_size, hidden_size):
    """Build kernel-friendly params: bf16 (in,out) weights, packed f32 vectors."""
    k1, k2, k3 = jax.random.split(key, 3)
    a_pad = _round_up(action_size, 128)   # lane-dense output padding

    # fc1 / fc2 Linear weights: orthogonal, gain sqrt(2); stored as (in, out).
    w1 = _orthogonal(k1, (hidden_size, state_size), math.sqrt(2.0)).T
    w2 = _orthogonal(k2, (hidden_size, hidden_size), math.sqrt(2.0)).T
    # fc3: uniform(-0.003, 0.003) weight, zero bias; lane-pad the action dim.
    w3 = jax.random.uniform(
        k3, (action_size, hidden_size), jnp.float32, -0.003, 0.003
    ).T
    w3p = jnp.zeros((hidden_size, a_pad), jnp.float32).at[:, :action_size].set(w3)

    # Packed per-feature vectors (f32): rows = b1, g1, be1, b2, g2, be2, pad, pad.
    vecs = jnp.zeros((8, hidden_size), jnp.float32)
    vecs = vecs.at[1].set(1.0)   # gamma1 = 1
    vecs = vecs.at[4].set(1.0)   # gamma2 = 1
    b3p = jnp.zeros((1, a_pad), jnp.float32)

    return (
        w1.astype(jnp.bfloat16),
        w2.astype(jnp.bfloat16),
        w3p.astype(jnp.bfloat16),
        vecs,
        b3p,
    )


def _reference_forward(x, params, action_size):
    """Pure-JAX reference mirroring the kernel's bf16-input matmuls."""
    w1, w2, w3p, vecs, b3p = params
    b1, g1, be1 = vecs[0:1], vecs[1:2], vecs[2:3]
    b2, g2, be2 = vecs[3:4], vecs[4:5], vecs[5:6]

    def dot_bf16(a, w):
        return jnp.dot(a.astype(jnp.bfloat16), w,
                       preferred_element_type=jnp.float32)

    def ln_relu(h, g, be):
        mu = jnp.mean(h, axis=-1, keepdims=True)
        var = jnp.mean((h - mu) ** 2, axis=-1, keepdims=True)
        return jnp.maximum((h - mu) / jnp.sqrt(var + LN_EPS) * g + be, 0.0)

    h = ln_relu(dot_bf16(x, w1) + b1, g1, be1)
    h = ln_relu(dot_bf16(h, w2) + b2, g2, be2)
    out = jnp.tanh(dot_bf16(h, w3p) + b3p)
    return out[:, :action_size]


if __name__ == "__main__":
    # Small shapes consistent with Actor.forward: state (B, state_size)
    batch, state_size, action_size, hidden_size = 2, 16, 4, 32

    key = jax.random.PRNGKey(0)
    k_param, k_x, k_x2 = jax.random.split(key, 3)
    params = init_actor_params(k_param, state_size, action_size, hidden_size)

    # Case 1: tiny batch (padded to 8 sublanes, grid=1).
    x = jax.random.normal(k_x, (batch, state_size), dtype=jnp.float32)
    out = jax.block_until_ready(actor_forward(x, params, action_size=action_size))
    ref = _reference_forward(x, params, action_size)
    assert out.shape == (batch, action_size), out.shape
    assert bool(jnp.all(jnp.abs(out) <= 1.0 + 1e-6))
    assert bool(jnp.allclose(out, ref, atol=2e-3, rtol=0.0)), float(
        jnp.max(jnp.abs(out - ref)))

    # Case 2: exercises batch grid > 1 plus batch padding (50 -> 64, tb=16).
    x2 = jax.random.normal(k_x2, (50, state_size), dtype=jnp.float32)
    out2 = jax.block_until_ready(
        actor_forward(x2, params, action_size=action_size, block_b=16))
    ref2 = _reference_forward(x2, params, action_size)
    assert out2.shape == (50, action_size), out2.shape
    assert bool(jnp.all(jnp.abs(out2) <= 1.0 + 1e-6))
    assert bool(jnp.allclose(out2, ref2, atol=2e-3, rtol=0.0)), float(
        jnp.max(jnp.abs(out2 - ref2)))

    print("KERNEL_OK")
</pallas_src>

<mosaic_0001>
module attributes {stable_mosaic.version = 11 : i64} {
  func.func @actor_kernel(%arg0: i32, %arg1: memref<8x16xf32, #tpu.memory_space<vmem>>, %arg2: memref<16x32xbf16, #tpu.memory_space<vmem>>, %arg3: memref<32x32xbf16, #tpu.memory_space<vmem>>, %arg4: memref<32x128xbf16, #tpu.memory_space<vmem>>, %arg5: memref<8x32xf32, #tpu.memory_space<vmem>>, %arg6: memref<1x128xf32, #tpu.memory_space<vmem>>, %arg7: memref<8x128xf32, #tpu.memory_space<vmem>>) attributes {dimension_semantics = [#tpu.dimension_semantics<parallel>], iteration_bounds = array<i64: 1>, scalar_prefetch = 0 : i64, scratch_operands = 0 : i64, tpu.core_type = #tpu.core_type<tc>, window_params = [{transform_indices = @transform_0, window_bounds = array<i64: 8, 16>}, {pipeline_mode = #tpu.pipeline_mode<synchronous>, transform_indices = @transform_1, window_bounds = array<i64: 16, 32>}, {pipeline_mode = #tpu.pipeline_mode<synchronous>, transform_indices = @transform_2, window_bounds = array<i64: 32, 32>}, {pipeline_mode = #tpu.pipeline_mode<synchronous>, transform_indices = @transform_3, window_bounds = array<i64: 32, 128>}, {pipeline_mode = #tpu.pipeline_mode<synchronous>, transform_indices = @transform_4, window_bounds = array<i64: 8, 32>}, {pipeline_mode = #tpu.pipeline_mode<synchronous>, transform_indices = @transform_5, window_bounds = array<i64: 1, 128>}, {transform_indices = @transform_6, window_bounds = array<i64: 8, 128>}]} {
    %c0 = arith.constant 0 : index
    %c0_0 = arith.constant 0 : index
    %0 = vector.load %arg5[%c0, %c0_0] : memref<8x32xf32, #tpu.memory_space<vmem>>, vector<1x32xf32>
    %c1 = arith.constant 1 : index
    %c0_1 = arith.constant 0 : index
    %1 = vector.load %arg5[%c1, %c0_1] : memref<8x32xf32, #tpu.memory_space<vmem>>, vector<1x32xf32>
    %c2 = arith.constant 2 : index
    %c0_2 = arith.constant 0 : index
    %2 = vector.load %arg5[%c2, %c0_2] : memref<8x32xf32, #tpu.memory_space<vmem>>, vector<1x32xf32>
    %c3 = arith.constant 3 : index
    %c0_3 = arith.constant 0 : index
    %3 = vector.load %arg5[%c3, %c0_3] : memref<8x32xf32, #tpu.memory_space<vmem>>, vector<1x32xf32>
    %c4 = arith.constant 4 : index
    %c0_4 = arith.constant 0 : index
    %4 = vector.load %arg5[%c4, %c0_4] : memref<8x32xf32, #tpu.memory_space<vmem>>, vector<1x32xf32>
    %c5 = arith.constant 5 : index
    %c0_5 = arith.constant 0 : index
    %5 = vector.load %arg5[%c5, %c0_5] : memref<8x32xf32, #tpu.memory_space<vmem>>, vector<1x32xf32>
    %c0_6 = arith.constant 0 : index
    %c0_7 = arith.constant 0 : index
    %6 = vector.load %arg1[%c0_6, %c0_7] : memref<8x16xf32, #tpu.memory_space<vmem>>, vector<8x16xf32>
    %7 = arith.truncf %6 : vector<8x16xf32> to vector<8x16xbf16>
    %c0_8 = arith.constant 0 : index
    %c0_9 = arith.constant 0 : index
    %8 = vector.load %arg2[%c0_8, %c0_9] : memref<16x32xbf16, #tpu.memory_space<vmem>>, vector<16x32xbf16>
    %cst = arith.constant dense<0.000000e+00> : vector<8x32xf32>
    %9 = tpu.matmul %7, %8, %cst {dimension_numbers = #tpu.dot_dimension_numbers<[1], [0], [0], [1], [0, 0, 1, 1], [], []>} : vector<8x16xbf16>, vector<16x32xbf16>, vector<8x32xf32> -> vector<8x32xf32>
    %10 = vector.broadcast %0 : vector<1x32xf32> to vector<8x32xf32>
    %11 = arith.addf %9, %10 : vector<8x32xf32>
    %cst_10 = arith.constant dense<0.000000e+00> : vector<8xf32>
    %12 = vector.multi_reduction <add>, %11, %cst_10 [1] : vector<8x32xf32> to vector<8xf32>
    %13 = vector.shape_cast %12 : vector<8xf32> to vector<8x1xf32>
    %cst_11 = arith.constant 3.200000e+01 : f32
    %14 = vector.broadcast %cst_11 : f32 to vector<8x1xf32>
    %15 = arith.divf %13, %14 : vector<8x1xf32>
    %16 = arith.mulf %11, %11 : vector<8x32xf32>
    %cst_12 = arith.constant dense<0.000000e+00> : vector<8xf32>
    %17 = vector.multi_reduction <add>, %16, %cst_12 [1] : vector<8x32xf32> to vector<8xf32>
    %18 = vector.shape_cast %17 : vector<8xf32> to vector<8x1xf32>
    %cst_13 = arith.constant 3.200000e+01 : f32
    %19 = vector.broadcast %cst_13 : f32 to vector<8x1xf32>
    %20 = arith.divf %18, %19 : vector<8x1xf32>
    %21 = arith.mulf %15, %15 : vector<8x1xf32>
    %22 = arith.subf %20, %21 : vector<8x1xf32>
    %23 = vector.broadcast %15 : vector<8x1xf32> to vector<8x32xf32>
    %24 = arith.subf %11, %23 : vector<8x32xf32>
    %cst_14 = arith.constant 9.99999974E-6 : f32
    %25 = vector.broadcast %cst_14 : f32 to vector<8x1xf32>
    %26 = arith.addf %22, %25 : vector<8x1xf32>
    %27 = math.rsqrt %26 : vector<8x1xf32>
    %28 = vector.broadcast %27 : vector<8x1xf32> to vector<8x32xf32>
    %29 = arith.mulf %24, %28 : vector<8x32xf32>
    %30 = vector.broadcast %1 : vector<1x32xf32> to vector<8x32xf32>
    %31 = arith.mulf %29, %30 : vector<8x32xf32>
    %32 = vector.broadcast %2 : vector<1x32xf32> to vector<8x32xf32>
    %33 = arith.addf %31, %32 : vector<8x32xf32>
    %cst_15 = arith.constant 0.000000e+00 : f32
    %34 = vector.broadcast %cst_15 : f32 to vector<8x32xf32>
    %35 = arith.maximumf %33, %34 : vector<8x32xf32>
    %36 = arith.truncf %35 : vector<8x32xf32> to vector<8x32xbf16>
    %c0_16 = arith.constant 0 : index
    %c0_17 = arith.constant 0 : index
    %37 = vector.load %arg3[%c0_16, %c0_17] : memref<32x32xbf16, #tpu.memory_space<vmem>>, vector<32x32xbf16>
    %cst_18 = arith.constant dense<0.000000e+00> : vector<8x32xf32>
    %38 = tpu.matmul %36, %37, %cst_18 {dimension_numbers = #tpu.dot_dimension_numbers<[1], [0], [0], [1], [0, 0, 1, 1], [], []>} : vector<8x32xbf16>, vector<32x32xbf16>, vector<8x32xf32> -> vector<8x32xf32>
    %39 = vector.broadcast %3 : vector<1x32xf32> to vector<8x32xf32>
    %40 = arith.addf %38, %39 : vector<8x32xf32>
    %cst_19 = arith.constant dense<0.000000e+00> : vector<8xf32>
    %41 = vector.multi_reduction <add>, %40, %cst_19 [1] : vector<8x32xf32> to vector<8xf32>
    %42 = vector.shape_cast %41 : vector<8xf32> to vector<8x1xf32>
    %cst_20 = arith.constant 3.200000e+01 : f32
    %43 = vector.broadcast %cst_20 : f32 to vector<8x1xf32>
    %44 = arith.divf %42, %43 : vector<8x1xf32>
    %45 = arith.mulf %40, %40 : vector<8x32xf32>
    %cst_21 = arith.constant dense<0.000000e+00> : vector<8xf32>
    %46 = vector.multi_reduction <add>, %45, %cst_21 [1] : vector<8x32xf32> to vector<8xf32>
    %47 = vector.shape_cast %46 : vector<8xf32> to vector<8x1xf32>
    %cst_22 = arith.constant 3.200000e+01 : f32
    %48 = vector.broadcast %cst_22 : f32 to vector<8x1xf32>
    %49 = arith.divf %47, %48 : vector<8x1xf32>
    %50 = arith.mulf %44, %44 : vector<8x1xf32>
    %51 = arith.subf %49, %50 : vector<8x1xf32>
    %52 = vector.broadcast %44 : vector<8x1xf32> to vector<8x32xf32>
    %53 = arith.subf %40, %52 : vector<8x32xf32>
    %cst_23 = arith.constant 9.99999974E-6 : f32
    %54 = vector.broadcast %cst_23 : f32 to vector<8x1xf32>
    %55 = arith.addf %51, %54 : vector<8x1xf32>
    %56 = math.rsqrt %55 : vector<8x1xf32>
    %57 = vector.broadcast %56 : vector<8x1xf32> to vector<8x32xf32>
    %58 = arith.mulf %53, %57 : vector<8x32xf32>
    %59 = vector.broadcast %4 : vector<1x32xf32> to vector<8x32xf32>
    %60 = arith.mulf %58, %59 : vector<8x32xf32>
    %61 = vector.broadcast %5 : vector<1x32xf32> to vector<8x32xf32>
    %62 = arith.addf %60, %61 : vector<8x32xf32>
    %cst_24 = arith.constant 0.000000e+00 : f32
    %63 = vector.broadcast %cst_24 : f32 to vector<8x32xf32>
    %64 = arith.maximumf %62, %63 : vector<8x32xf32>
    %65 = arith.truncf %64 : vector<8x32xf32> to vector<8x32xbf16>
    %c0_25 = arith.constant 0 : index
    %c0_26 = arith.constant 0 : index
    %66 = vector.load %arg4[%c0_25, %c0_26] : memref<32x128xbf16, #tpu.memory_space<vmem>>, vector<32x128xbf16>
    %cst_27 = arith.constant dense<0.000000e+00> : vector<8x128xf32>
    %67 = tpu.matmul %65, %66, %cst_27 {dimension_numbers = #tpu.dot_dimension_numbers<[1], [0], [0], [1], [0, 0, 1, 1], [], []>} : vector<8x32xbf16>, vector<32x128xbf16>, vector<8x128xf32> -> vector<8x128xf32>
    %c0_28 = arith.constant 0 : index
    %c0_29 = arith.constant 0 : index
    %68 = vector.load %arg6[%c0_28, %c0_29] : memref<1x128xf32, #tpu.memory_space<vmem>>, vector<1x128xf32>
    %69 = vector.broadcast %68 : vector<1x128xf32> to vector<8x128xf32>
    %70 = arith.addf %67, %69 : vector<8x128xf32>
    %71 = math.tanh %70 : vector<8x128xf32>
    %c0_30 = arith.constant 0 : index
    %c0_31 = arith.constant 0 : index
    %72 = vector.load %arg7[%c0_30, %c0_31] : memref<8x128xf32, #tpu.memory_space<vmem>>, vector<8x128xf32>
    tpu.vector_store %arg7[%c0_30, %c0_31], %71 {strides = array<i32>} : memref<8x128xf32, #tpu.memory_space<vmem>>, vector<8x128xf32>,
    return
  }
  func.func @transform_0(%arg0: i32) -> (i32, i32) {
    %c0_i32 = arith.constant 0 : i32
    %c0_i32_0 = arith.constant 0 : i32
    return %arg0, %c0_i32 : i32, i32
  }
  func.func @transform_1(%arg0: i32) -> (i32, i32) {
    %c0_i32 = arith.constant 0 : i32
    %c0_i32_0 = arith.constant 0 : i32
    %c0_i32_1 = arith.constant 0 : i32
    return %c0_i32, %c0_i32_0 : i32, i32
  }
  func.func @transform_2(%arg0: i32) -> (i32, i32) {
    %c0_i32 = arith.constant 0 : i32
    %c0_i32_0 = arith.constant 0 : i32
    %c0_i32_1 = arith.constant 0 : i32
    return %c0_i32, %c0_i32_0 : i32, i32
  }
  func.func @transform_3(%arg0: i32) -> (i32, i32) {
    %c0_i32 = arith.constant 0 : i32
    %c0_i32_0 = arith.constant 0 : i32
    %c0_i32_1 = arith.constant 0 : i32
    return %c0_i32, %c0_i32_0 : i32, i32
  }
  func.func @transform_4(%arg0: i32) -> (i32, i32) {
    %c0_i32 = arith.constant 0 : i32
    %c0_i32_0 = arith.constant 0 : i32
    %c0_i32_1 = arith.constant 0 : i32
    return %c0_i32, %c0_i32_0 : i32, i32
  }
  func.func @transform_5(%arg0: i32) -> (i32, i32) {
    %c0_i32 = arith.constant 0 : i32
    %c0_i32_0 = arith.constant 0 : i32
    %c0_i32_1 = arith.constant 0 : i32
    return %c0_i32, %c0_i32_0 : i32, i32
  }
  func.func @transform_6(%arg0: i32) -> (i32, i32) {
    %c0_i32 = arith.constant 0 : i32
    %c0_i32_0 = arith.constant 0 : i32
    return %arg0, %c0_i32 : i32, i32
  }
}

</mosaic_0001>

<llo_original>
// kernel: actor_forward.1
$region0: #{actor_forward.1}
  #allocation0 [shape = 'u32[]', space=smem, size = 0x4, offset = 0x4, fixed_abs, tag = 'smem constant byte address 0x4 - core index']
  #allocation1 [shape = 'u32[144,128]{1,0:T(1,128)}', space=vmem, size = 0x12000, scoped, tag = 'internal scratch']
  %s0 = inlined_call_operand.vmem [shape: f32[8,16], index: 0, kind: input, shape index: {}]
  %s1 = inlined_call_operand.hbm [shape: bf16[16,32], index: 1, kind: input, shape index: {}]
  %s2 = inlined_call_operand.vmem [shape: bf16[32,32], index: 2, kind: input, shape index: {}]
  %s3 = inlined_call_operand.hbm [shape: bf16[32,128], index: 3, kind: input, shape index: {}]
  %s4 = inlined_call_operand.vmem [shape: f32[8,32], index: 4, kind: input, shape index: {}]
  %s5 = inlined_call_operand.vmem [shape: f32[1,128], index: 5, kind: input, shape index: {}]
  %s6 = inlined_call_operand.vmem [shape: f32[8,128], index: 6, kind: output, shape index: {}]
  %s7 = sld [smem:[#allocation0]]
  $region42: #{actor_forward.1} parent=0
    _
  %s9 = ssub.s32 1, %s7
  %s10 = scalar_select 0, %s9, %s7
  $region1: #{actor_forward.1} parent=0
    #allocation2 [shape = 'u8[4096]{0}', space=vmem, size = 0x1000, scoped, tag = 'input window, operand 1, single buffered']
    #allocation3 [shape = 's32[1]{0}', space=sflag, size = 0x4, scoped, tag = 'scoped memory for actor_forward.1']
    #allocation4 [shape = 'u8[8192]{0}', space=vmem, size = 0x2000, scoped, tag = 'input window, operand 3, single buffered']
    #allocation5 [shape = 's32[1]{0}', space=sflag, size = 0x4, scoped, tag = 'scoped memory for actor_forward.1']
    %11 = vsyncpa [#allocation3], 0
    %12 = vsyncpa [#allocation5], 0
    // Predicated region
    $region2: #{actor_forward.1} parent=1 // pred_check
      _
    $region3: #{actor_forward.1} parent=1 // pred_check_branch
      %14 = sbr.rel (0) target = $region5
    $region4: #{actor_forward.1} parent=1 // pred_region
      _
    $region5: #{actor_forward.1} parent=1 // pred_fallthru
      _
    // Predicated region
    $region6: #{actor_forward.1} parent=1 // pred_check
      _
    $region7: #{actor_forward.1} parent=1 // pred_check_branch
      %16 = sbr.rel (0) target = $region9
    $region8: #{actor_forward.1} parent=1 // pred_region
      %s18 = ssub.s32 128, 128
      %19 = vsyncadd [#allocation3], %s18
      %s20 = sshll.u32 [#allocation2], 4
      %s21 = int_to_ptr.vmem [resolvable:$true] %s20
      %26 = dma.hbm_to_vmem [thread:$0]  %s1, 128, %s21, [#allocation3], 64, 64, 4
    $region9: #{actor_forward.1} parent=1 // pred_fallthru
      _
    // Predicated region
    $region10: #{actor_forward.1} parent=1 // pred_check
      _
    $region11: #{actor_forward.1} parent=1 // pred_check_branch
      %28 = sbr.rel (0) target = $region13
    $region12: #{actor_forward.1} parent=1 // pred_region
      _
    $region13: #{actor_forward.1} parent=1 // pred_fallthru
      _
    // Predicated region
    $region14: #{actor_forward.1} parent=1 // pred_check
      _
    $region15: #{actor_forward.1} parent=1 // pred_check_branch
      %30 = sbr.rel (0) target = $region17
    $region16: #{actor_forward.1} parent=1 // pred_region
      %s32 = ssub.s32 256, 256
      %33 = vsyncadd [#allocation5], %s32
      %s34 = sshll.u32 [#allocation4], 4
      %s35 = int_to_ptr.vmem [resolvable:$true] %s34
      %40 = dma.hbm_to_vmem [thread:$0]  %s3, 256, %s35, [#allocation5], 64, 64, 4
    $region17: #{actor_forward.1} parent=1 // pred_fallthru
      _
    // Predicated region
    $region18: #{actor_forward.1} parent=1 // pred_check
      _
    $region19: #{actor_forward.1} parent=1 // pred_check_branch
      %42 = sbr.rel (0) target = $region21
    $region20: #{actor_forward.1} parent=1 // pred_region
      _
    $region21: #{actor_forward.1} parent=1 // pred_fallthru
      _
    // Predicated region
    $region22: #{actor_forward.1} parent=1 // pred_check
      _
    $region23: #{actor_forward.1} parent=1 // pred_check_branch
      %44 = sbr.rel (0) target = $region25
    $region24: #{actor_forward.1} parent=1 // pred_region
      _
    $region25: #{actor_forward.1} parent=1 // pred_fallthru
      _
    // Predicated region
    $region26: #{actor_forward.1} parent=1 // pred_check
      _
    $region27: #{actor_forward.1} parent=1 // pred_check_branch
      %46 = sbr.rel (0) target = $region29
    $region28: #{actor_forward.1} parent=1 // pred_region
      %47 = dma.done [#allocation3], 128
    $region29: #{actor_forward.1} parent=1 // pred_fallthru
      _
    // Predicated region
    $region30: #{actor_forward.1} parent=1 // pred_check
      _
    $region31: #{actor_forward.1} parent=1 // pred_check_branch
      %49 = sbr.rel (0) target = $region33
    $region32: #{actor_forward.1} parent=1 // pred_region
      %50 = dma.done [#allocation5], 256
    $region33: #{actor_forward.1} parent=1 // pred_fallthru
      _
    %v52 = vld [vmem:[%s4] sm:$0x1]
    %v53 = vld [vmem:[%s4 + $0x1] sm:$0x1]
    %v54 = vld [vmem:[%s4 + $0x2] sm:$0x1]
    %v55 = vld [vmem:[%s4 + $0x3] sm:$0x1]
    %v56 = vld [vmem:[%s4 + $0x4] sm:$0x1]
    %v57 = vld [vmem:[%s4 + $0x5] sm:$0x1]
    %v58 = vld [vmem:[%s0] sm:$0xff]
    %v59 = vpack.c.bf16 %v58, %v58
    %v60 = vld [vmem:[#allocation2] sm:$0xf]
    %v61 = vld [vmem:[#allocation2 + $0x4] sm:$0xf]
    %v62 = vlaneseq
    %v63 = vshrl.u32 %v62, 7
    %v64 = vsub.s32 0, %v63
    %v65 = vrot.slane %v52, %v64
    %v68 = vunpack.c.l.b16 %v60
    %v69 = vunpack.c.l.b16 %v61
    %v70 = vpack.c.b16 %v69, %v68
    %vm72 = vcmask 130048
    %v74 = vsel %vm72, %v59, 0
    %76 = vmatprep.subr.bf16.mxu0 0
    %77 = vmatpush1.bf16.msra.mxu0 %v70
    %78 = vmatprep.subr.bf16.mxu0 0
    %79 = vmatpush1.bf16.msra.mxu0 0
    %80 = vmatprep.subr.bf16.mxu0 0
    %81 = vmatpush1.bf16.msra.mxu0 0
    %82 = vmatprep.subr.bf16.mxu0 0
    %83 = vmatpush1.bf16.msra.mxu0 0
    %84 = vmatprep.subr.bf16.mxu0 0
    %85 = vmatpush1.bf16.msra.mxu0 0
    %86 = vmatprep.subr.bf16.mxu0 0
    %87 = vmatpush1.bf16.msra.mxu0 0
    %88 = vmatprep.subr.bf16.mxu0 0
    %89 = vmatpush1.bf16.msra.mxu0 0
    %90 = vmatprep.subr.bf16.mxu0 0
    %91 = vmatpush1.bf16.msra.mxu0 0
    %92 = vmatprep.subr.bf16.mxu0 0
    %93 = vmatpush1.bf16.msra.mxu0 0
    %94 = vmatprep.subr.bf16.mxu0 0
    %95 = vmatpush1.bf16.msra.mxu0 0
    %96 = vmatprep.subr.bf16.mxu0 0
    %97 = vmatpush1.bf16.msra.mxu0 0
    %98 = vmatprep.subr.bf16.mxu0 0
    %99 = vmatpush1.bf16.msra.mxu0 0
    %100 = vmatprep.subr.bf16.mxu0 0
    %101 = vmatpush1.bf16.msra.mxu0 0
    %102 = vmatprep.subr.bf16.mxu0 0
    %103 = vmatpush1.bf16.msra.mxu0 0
    %104 = vmatprep.subr.bf16.mxu0 0
    %105 = vmatpush1.bf16.msra.mxu0 0
    %106 = vmatprep.subr.bf16.mxu0 0
    %107 = vmatpush1.bf16.msra.mxu0 0
    %108 = vmatprep.mubr.bf16.mxu0 0
    %109 = vmatmul.mubr.bf16.gmra.mrb[0].mxu0 %v74
    %v110 = vpop.f32.mrb[0].mxu0
    %v111 = vadd.f32 %v65, %v110
    %v112 = vpop.f32.mrb[0].mxu0
    %v113 = vpop.f32.mrb[0].mxu0
    %v114 = vpop.f32.mrb[0].mxu0
    %115 = vdwg.mxu0
    %vm116 = vcmask 261120
    %v117 = vsel %vm116, %v111, 0.0
    %118 = vadd.xlane.f32.xlu0 %v117
    %v119 = vpop.xlane.xlu0 %118
    %v120 = vrcp.pop 32.0
    %v121 = vmul.f32 %v119, %v120
    %v122 = vmul.f32 %v111, %v111
    %v123 = vsel %vm116, %v122, 0.0
    %124 = vadd.xlane.f32.xlu0 %v123
    %v125 = vpop.xlane.xlu0 %124
    %v126 = vmul.f32 %v125, %v120
    %v127 = vmul.f32 %v121, %v121
    %v128 = vsub.f32 %v126, %v127
    %v129 = vsub.f32 %v111, %v121
    %v130 = vadd.f32 %v128, 1e-05
    %v131 = vrsqrt.pop %v130
    %v132 = vmul.f32 %v129, %v131
    %v133 = vlaneseq
    %v134 = vshrl.u32 %v133, 7
    %v135 = vsub.s32 0, %v134
    %v136 = vrot.slane %v53, %v135
    %v137 = vmul.f32 %v132, %v136
    %v138 = vlaneseq
    %v139 = vshrl.u32 %v138, 7
    %v140 = vsub.s32 0, %v139
    %v141 = vrot.slane %v54, %v140
    %v142 = vadd.f32 %v137, %v141
    %v143 = vmax.f32 %v142, 0.0
    %v144 = vpack.c.bf16 %v143, %v143
    %v145 = vld [vmem:[%s2] sm:$0xf]
    %v146 = vld [vmem:[%s2 + $0x4] sm:$0xf]
    %v147 = vld [vmem:[%s2 + $0x8] sm:$0xf]
    %v148 = vld [vmem:[%s2 + $0xc] sm:$0xf]
    %v149 = vlaneseq
    %v150 = vshrl.u32 %v149, 7
    %v151 = vsub.s32 0, %v150
    %v152 = vrot.slane %v55, %v151
    %v157 = vunpack.c.l.b16 %v145
    %v158 = vunpack.c.l.b16 %v146
    %v159 = vunpack.c.l.b16 %v147
    %v160 = vunpack.c.l.b16 %v148
    %v161 = vpack.c.b16 %v158, %v157
    %v162 = vpack.c.b16 %v160, %v159
    %v166 = vsel %vm116, %v144, 0
    %168 = vmatprep.subr.bf16.mxu0 0
    %169 = vmatpush1.bf16.msra.mxu0 %v161
    %170 = vmatprep.subr.bf16.mxu0 0
    %171 = vmatpush1.bf16.msra.mxu0 %v162
    %172 = vmatprep.subr.bf16.mxu0 0
    %173 = vmatpush1.bf16.msra.mxu0 0
    %174 = vmatprep.subr.bf16.mxu0 0
    %175 = vmatpush1.bf16.msra.mxu0 0
    %176 = vmatprep.subr.bf16.mxu0 0
    %177 = vmatpush1.bf16.msra.mxu0 0
    %178 = vmatprep.subr.bf16.mxu0 0
    %179 = vmatpush1.bf16.msra.mxu0 0
    %180 = vmatprep.subr.bf16.mxu0 0
    %181 = vmatpush1.bf16.msra.mxu0 0
    %182 = vmatprep.subr.bf16.mxu0 0
    %183 = vmatpush1.bf16.msra.mxu0 0
    %184 = vmatprep.subr.bf16.mxu0 0
    %185 = vmatpush1.bf16.msra.mxu0 0
    %186 = vmatprep.subr.bf16.mxu0 0
    %187 = vmatpush1.bf16.msra.mxu0 0
    %188 = vmatprep.subr.bf16.mxu0 0
    %189 = vmatpush1.bf16.msra.mxu0 0
    %190 = vmatprep.subr.bf16.mxu0 0
    %191 = vmatpush1.bf16.msra.mxu0 0
    %192 = vmatprep.subr.bf16.mxu0 0
    %193 = vmatpush1.bf16.msra.mxu0 0
    %194 = vmatprep.subr.bf16.mxu0 0
    %195 = vmatpush1.bf16.msra.mxu0 0
    %196 = vmatprep.subr.bf16.mxu0 0
    %197 = vmatpush1.bf16.msra.mxu0 0
    %198 = vmatprep.subr.bf16.mxu0 0
    %199 = vmatpush1.bf16.msra.mxu0 0
    %200 = vmatprep.mubr.bf16.mxu0 0
    %201 = vmatmul.mubr.bf16.gmra.mrb[0].mxu0 %v166
    %v202 = vpop.f32.mrb[0].mxu0
    %v203 = vadd.f32 %v152, %v202
    %v204 = vpop.f32.mrb[0].mxu0
    %v205 = vpop.f32.mrb[0].mxu0
    %v206 = vpop.f32.mrb[0].mxu0
    %207 = vdwg.mxu0
    %v208 = vsel %vm116, %v203, 0.0
    %209 = vadd.xlane.f32.xlu0 %v208
    %v210 = vpop.xlane.xlu0 %209
    %v211 = vmul.f32 %v210, %v120
    %v212 = vmul.f32 %v203, %v203
    %v213 = vsel %vm116, %v212, 0.0
    %214 = vadd.xlane.f32.xlu0 %v213
    %v215 = vpop.xlane.xlu0 %214
    %v216 = vmul.f32 %v215, %v120
    %v217 = vmul.f32 %v211, %v211
    %v218 = vsub.f32 %v216, %v217
    %v219 = vsub.f32 %v203, %v211
    %v220 = vadd.f32 %v218, 1e-05
    %v221 = vrsqrt.pop %v220
    %v222 = vmul.f32 %v219, %v221
    %v223 = vlaneseq
    %v224 = vshrl.u32 %v223, 7
    %v225 = vsub.s32 0, %v224
    %v226 = vrot.slane %v56, %v225
    %v227 = vmul.f32 %v222, %v226
    %v228 = vlaneseq
    %v229 = vshrl.u32 %v228, 7
    %v230 = vsub.s32 0, %v229
    %v231 = vrot.slane %v57, %v230
    %v232 = vadd.f32 %v227, %v231
    %v233 = vmax.f32 %v232, 0.0
    %v234 = vpack.c.bf16 %v233, %v233
    %v235 = vld [vmem:[#allocation4] sm:$0xf]
    %v236 = vld [vmem:[#allocation4 + $0x4] sm:$0xf]
    %v237 = vld [vmem:[#allocation4 + $0x8] sm:$0xf]
    %v238 = vld [vmem:[#allocation4 + $0xc] sm:$0xf]
    %v239 = vld [vmem:[%s5] sm:$0x1]
    %v241 = vlaneseq
    %v242 = vshrl.u32 %v241, 7
    %v243 = vsub.s32 0, %v242
    %v244 = vrot.slane %v239, %v243
    %v250 = vunpack.c.l.b16 %v235
    %v251 = vunpack.c.l.b16 %v236
    %v252 = vunpack.c.l.b16 %v237
    %v253 = vunpack.c.l.b16 %v238
    %v254 = vpack.c.b16 %v251, %v250
    %v255 = vpack.c.b16 %v253, %v252
    %v259 = vsel %vm116, %v234, 0
    %261 = vmatprep.subr.bf16.mxu0 0
    %262 = vmatpush1.bf16.msra.mxu0 %v254
    %263 = vmatprep.subr.bf16.mxu0 0
    %264 = vmatpush1.bf16.msra.mxu0 %v255
    %265 = vmatprep.subr.bf16.mxu0 0
    %266 = vmatpush1.bf16.msra.mxu0 0
    %267 = vmatprep.subr.bf16.mxu0 0
    %268 = vmatpush1.bf16.msra.mxu0 0
    %269 = vmatprep.subr.bf16.mxu0 0
    %270 = vmatpush1.bf16.msra.mxu0 0
    %271 = vmatprep.subr.bf16.mxu0 0
    %272 = vmatpush1.bf16.msra.mxu0 0
    %273 = vmatprep.subr.bf16.mxu0 0
    %274 = vmatpush1.bf16.msra.mxu0 0
    %275 = vmatprep.subr.bf16.mxu0 0
    %276 = vmatpush1.bf16.msra.mxu0 0
    %277 = vmatprep.subr.bf16.mxu0 0
    %278 = vmatpush1.bf16.msra.mxu0 0
    %279 = vmatprep.subr.bf16.mxu0 0
    %280 = vmatpush1.bf16.msra.mxu0 0
    %281 = vmatprep.subr.bf16.mxu0 0
    %282 = vmatpush1.bf16.msra.mxu0 0
    %283 = vmatprep.subr.bf16.mxu0 0
    %284 = vmatpush1.bf16.msra.mxu0 0
    %285 = vmatprep.subr.bf16.mxu0 0
    %286 = vmatpush1.bf16.msra.mxu0 0
    %287 = vmatprep.subr.bf16.mxu0 0
    %288 = vmatpush1.bf16.msra.mxu0 0
    %289 = vmatprep.subr.bf16.mxu0 0
    %290 = vmatpush1.bf16.msra.mxu0 0
    %291 = vmatprep.subr.bf16.mxu0 0
    %292 = vmatpush1.bf16.msra.mxu0 0
    %293 = vmatprep.mubr.bf16.mxu0 0
    %294 = vmatmul.mubr.bf16.gmra.mrb[0].mxu0 %v259
    %v295 = vpop.f32.mrb[0].mxu0
    %v296 = vadd.f32 %v244, %v295
    %v297 = vpop.f32.mrb[0].mxu0
    %v298 = vpop.f32.mrb[0].mxu0
    %v299 = vpop.f32.mrb[0].mxu0
    %300 = vdwg.mxu0
    %v301 = vtanh.pop %v296
    %302 = vst [vmem:[%s6] sm:$0xff] %v301
    // Predicated region
    $region34: #{actor_forward.1} parent=1 // pred_check
      _
    $region35: #{actor_forward.1} parent=1 // pred_check_branch
      %304 = sbr.rel (0) target = $region37
    $region36: #{actor_forward.1} parent=1 // pred_region
      _
    $region37: #{actor_forward.1} parent=1 // pred_fallthru
      _
    // Predicated region
    $region38: #{actor_forward.1} parent=1 // pred_check
      _
    $region39: #{actor_forward.1} parent=1 // pred_check_branch
      %306 = sbr.rel (0) target = $region41
    $region40: #{actor_forward.1} parent=1 // pred_region
      _
    $region41: #{actor_forward.1} parent=1 // pred_fallthru
      _
    %307 = vsyncpa [#allocation3], 1
    %308 = vsyncpa [#allocation5], 1

</llo_original>
